<compile_context>
chip_gen: v5e
topology: v5e:2x2
jax: 0.10.0
libtpu: 0.0.40
codegen_flags: <defaults>
</compile_context>

<pallas_src>
import jax
import jax.numpy as jnp
from jax.experimental import pallas as pl
from jax.experimental.pallas import tpu as pltpu


def _round_up(n, m):
    return ((n + m - 1) // m) * m


def base_tower_kernel(x_ref, w1_ref, b1_ref, w2_ref, b2_ref, o_ref):
    x = x_ref[...]
    if x.dtype != w1_ref.dtype:
        # In-kernel cast to the MXU input dtype (VPU op, no extra HBM pass).
        x = x.astype(w1_ref.dtype)
    # Linear 1 on the MXU with f32 accumulation; bias-add + ReLU in f32 (VPU).
    h = jnp.dot(x, w1_ref[...], preferred_element_type=jnp.float32)
    h = jnp.maximum(h + b1_ref[...], 0.0)                 # (tb,H) + (1,H)
    # Linear 2: activations cast back to the weight dtype for the MXU, f32 acc.
    out = jnp.dot(h.astype(w2_ref.dtype), w2_ref[...],
                  preferred_element_type=jnp.float32)
    o_ref[...] = (out + b2_ref[...]).astype(o_ref.dtype)  # (tb,E) native-E store


def _default_vmem_limit():
    """Scoped-VMEM limit picked from the actual chip (v7x has half the VMEM)."""
    try:
        cap = int(pltpu.get_tpu_info().vmem_capacity_bytes)
    except Exception:
        cap = 64 * 1024 * 1024  # conservative (v7x-sized) fallback
    # ~3/4 of physical: 48 MiB on v7x (64 MiB), 96 MiB on v5e/v6e (128 MiB).
    return int(min(cap * 3 // 4, 112 * 1024 * 1024))


def _choose_block_b(B, D_in, H, E, in_bytes, out_bytes, vmem_budget):
    """Largest batch tile (rows) that fits the VMEM budget."""
    # Resident, single-buffered weights + f32 biases.
    resident = (D_in * H + H * E) * in_bytes + (H + E) * 4
    # Per-row VMEM: double-buffered x tile, double-buffered output tile, and
    # the per-tile f32 temporaries the kernel creates (h, its cast copy for
    # the second matmul, and the f32 accumulator of the second matmul).
    per_row = (2 * D_in * in_bytes
               + 2 * E * out_bytes
               + H * 4 + H * in_bytes + E * 4)
    avail = max(vmem_budget - resident, 8 * per_row)
    tb = min(int(avail // per_row), 8192)

    b8 = _round_up(B, 8)
    tb = min(tb, b8)
    # Keep >= 2 batch tiles whenever the batch is big enough to split, so the
    # "parallel" grid axis feeds both TensorCores on v7x (free on v5e/v6e).
    if b8 >= 16:
        tb = min(tb, _round_up((B + 1) // 2, 8))
    if tb >= 512:
        # MXU on v6e/v7x is 256-wide; M=tb is the only axis we can fill.
        tb = (tb // 256) * 256
    else:
        tb = max(8, (tb // 8) * 8)
    return tb


def prepare_tower_params(w1, b1, w2, b2, compute_dtype=None):
    """One-time weight cast / bias reshape (hoisted out of the per-call path)."""
    cdt = compute_dtype if compute_dtype is not None else w1.dtype
    return (w1.astype(cdt),
            b1.astype(jnp.float32).reshape(1, -1),
            w2.astype(cdt),
            b2.astype(jnp.float32).reshape(1, -1))


def _resident_spec(shape, single_buffer):
    idx = lambda i: (0,) * len(shape)
    if single_buffer:
        return pl.BlockSpec(shape, idx, pipeline_mode=pl.Buffered(1))
    return pl.BlockSpec(shape, idx)


def _run(xp, w1, b1r, w2, b2r, tb, out_dtype, vmem_limit, single_buffer_weights):
    Bp, D_in = xp.shape
    H = w1.shape[1]
    E = w2.shape[1]
    in_bytes = jnp.dtype(w1.dtype).itemsize

    cost = pl.CostEstimate(
        flops=2 * Bp * D_in * H + 2 * Bp * H * E,
        transcendentals=0,
        bytes_accessed=(Bp * D_in * jnp.dtype(xp.dtype).itemsize
                        + (D_in * H + H * E) * in_bytes
                        + (H + E) * 4
                        + Bp * E * jnp.dtype(out_dtype).itemsize),
    )

    return pl.pallas_call(
        base_tower_kernel,
        out_shape=jax.ShapeDtypeStruct((Bp, E), out_dtype),
        grid_spec=pltpu.PrefetchScalarGridSpec(
            num_scalar_prefetch=0,
            grid=(Bp // tb,),
            in_specs=[
                pl.BlockSpec((tb, D_in), lambda i: (i, 0)),     # x: batch-tiled, no pad
                _resident_spec((D_in, H), single_buffer_weights),  # W1 resident
                _resident_spec((1, H), single_buffer_weights),     # b1 resident
                _resident_spec((H, E), single_buffer_weights),     # W2 resident
                _resident_spec((1, E), single_buffer_weights),     # b2 resident
            ],
            out_specs=pl.BlockSpec((tb, E), lambda i: (i, 0)),  # native-E output
        ),
        compiler_params=pltpu.CompilerParams(
            dimension_semantics=("parallel",),       # megacore-shard batch tiles
            vmem_limit_bytes=vmem_limit),
        cost_estimate=cost,
    )(xp, w1, b1r, w2, b2r)


def base_tower_forward(x, w1, b1, w2, b2, *, vmem_limit_bytes=None):
    """x: (B, input_dim) -> (B, embedding_dim) via one fused Pallas kernel.

    Weights may come from prepare_tower_params (cast/reshaped once at init).
    If x.dtype differs from the weight dtype (e.g. bf16 weights, f32 x), the
    cast of x happens inside the kernel; accumulation / bias / ReLU stay f32.
    """
    B, D_in = x.shape
    H = w1.shape[1]
    E = w2.shape[1]
    out_dtype = x.dtype
    in_bytes = jnp.dtype(w1.dtype).itemsize
    out_bytes = jnp.dtype(out_dtype).itemsize

    vmem_limit = (vmem_limit_bytes if vmem_limit_bytes is not None
                  else _default_vmem_limit())

    if B <= 8:
        tb = B   # full-dim block (exempt from the (8,128) rule)
    else:
        tb = _choose_block_b(B, D_in, H, E, in_bytes, out_bytes,
                             vmem_budget=int(vmem_limit * 0.9))

    b_pad = _round_up(B, tb)
    xp = x if b_pad == B else jnp.pad(x, ((0, b_pad - B), (0, 0)))

    # Accept raw 1-D biases too (prepared params are already (1, H)/(1, E) f32).
    b1r = (b1 if b1.ndim == 2 else b1.reshape(1, -1)).astype(jnp.float32)
    b2r = (b2 if b2.ndim == 2 else b2.reshape(1, -1)).astype(jnp.float32)

    try:
        out = _run(xp, w1, b1r, w2, b2r, tb, out_dtype, vmem_limit,
                   single_buffer_weights=True)
    except Exception:
        # Fallback if this runtime rejects single-buffered resident operands.
        out = _run(xp, w1, b1r, w2, b2r, tb, out_dtype, vmem_limit,
                   single_buffer_weights=False)

    return out if b_pad == B else out[:B]


def init_params(key, input_dim, embedding_dim, hidden=128, dtype=jnp.float32):
    """Deterministic init mimicking nn.Linear's uniform(-1/sqrt(fan_in), +)."""
    k1, k2, k3, k4 = jax.random.split(key, 4)
    lim1 = 1.0 / jnp.sqrt(input_dim)
    lim2 = 1.0 / jnp.sqrt(hidden)
    w1 = jax.random.uniform(k1, (input_dim, hidden), dtype, -lim1, lim1)
    b1 = jax.random.uniform(k2, (hidden,), dtype, -lim1, lim1)
    w2 = jax.random.uniform(k3, (hidden, embedding_dim), dtype, -lim2, lim2)
    b2 = jax.random.uniform(k4, (embedding_dim,), dtype, -lim2, lim2)
    return w1, b1, w2, b2


if __name__ == "__main__":
    key = jax.random.PRNGKey(0)
    batch, input_dim, embedding_dim = 8, 32, 16

    kx, kp = jax.random.split(key)
    x = jax.random.normal(kx, (batch, input_dim), jnp.float32)
    w1, b1, w2, b2 = init_params(kp, input_dim, embedding_dim)

    # Pure-JAX f32 reference of the same math.
    ref = jnp.maximum(x @ w1 + b1, 0.0) @ w2 + b2

    # --- f32 path: tight check against the reference. ---
    p_f32 = prepare_tower_params(w1, b1, w2, b2)             # cast/reshape once
    out_f32 = jax.block_until_ready(base_tower_forward(x, *p_f32))
    assert out_f32.shape == (batch, embedding_dim)
    assert jnp.allclose(out_f32, ref, atol=1e-5, rtol=1e-5)

    # --- bf16 MXU path: check against a bf16 JAX reference doing the same casts. ---
    p_bf16 = prepare_tower_params(w1, b1, w2, b2, compute_dtype=jnp.bfloat16)
    out_bf16 = jax.block_until_ready(base_tower_forward(x, *p_bf16))
    assert out_bf16.shape == (batch, embedding_dim)

    xb = x.astype(jnp.bfloat16)
    h_ref = jnp.maximum(
        jnp.dot(xb, w1.astype(jnp.bfloat16), preferred_element_type=jnp.float32)
        + b1.astype(jnp.float32), 0.0)
    ref_bf16 = (jnp.dot(h_ref.astype(jnp.bfloat16), w2.astype(jnp.bfloat16),
                        preferred_element_type=jnp.float32)
                + b2.astype(jnp.float32))
    assert jnp.allclose(out_bf16, ref_bf16, atol=2e-3, rtol=2e-3)
    assert jnp.allclose(out_bf16, ref, atol=1e-1, rtol=1e-1)  # sanity vs f32

    print("KERNEL_OK")
</pallas_src>

<mosaic_0001>
module attributes {stable_mosaic.version = 11 : i64} {
  func.func @base_tower_kernel(%arg0: i32, %arg1: memref<8x32xf32, #tpu.memory_space<vmem>>, %arg2: memref<32x128xf32, #tpu.memory_space<vmem>>, %arg3: memref<1x128xf32, #tpu.memory_space<vmem>>, %arg4: memref<128x16xf32, #tpu.memory_space<vmem>>, %arg5: memref<1x16xf32, #tpu.memory_space<vmem>>, %arg6: memref<8x16xf32, #tpu.memory_space<vmem>>) attributes {dimension_semantics = [#tpu.dimension_semantics<parallel>], iteration_bounds = array<i64: 1>, scalar_prefetch = 0 : i64, scratch_operands = 0 : i64, tpu.core_type = #tpu.core_type<tc>, window_params = [{transform_indices = @transform_0, window_bounds = array<i64: 8, 32>}, {pipeline_mode = #tpu.pipeline_mode<synchronous>, transform_indices = @transform_1, window_bounds = array<i64: 32, 128>}, {pipeline_mode = #tpu.pipeline_mode<synchronous>, transform_indices = @transform_2, window_bounds = array<i64: 1, 128>}, {pipeline_mode = #tpu.pipeline_mode<synchronous>, transform_indices = @transform_3, window_bounds = array<i64: 128, 16>}, {pipeline_mode = #tpu.pipeline_mode<synchronous>, transform_indices = @transform_4, window_bounds = array<i64: 1, 16>}, {transform_indices = @transform_5, window_bounds = array<i64: 8, 16>}]} {
    %c0 = arith.constant 0 : index
    %c0_0 = arith.constant 0 : index
    %0 = vector.load %arg1[%c0, %c0_0] : memref<8x32xf32, #tpu.memory_space<vmem>>, vector<8x32xf32>
    %c0_1 = arith.constant 0 : index
    %c0_2 = arith.constant 0 : index
    %1 = vector.load %arg2[%c0_1, %c0_2] : memref<32x128xf32, #tpu.memory_space<vmem>>, vector<32x128xf32>
    %cst = arith.constant dense<0.000000e+00> : vector<8x128xf32>
    %2 = tpu.matmul %0, %1, %cst {dimension_numbers = #tpu.dot_dimension_numbers<[1], [0], [0], [1], [0, 0, 1, 1], [], []>} : vector<8x32xf32>, vector<32x128xf32>, vector<8x128xf32> -> vector<8x128xf32>
    %c0_3 = arith.constant 0 : index
    %c0_4 = arith.constant 0 : index
    %3 = vector.load %arg3[%c0_3, %c0_4] : memref<1x128xf32, #tpu.memory_space<vmem>>, vector<1x128xf32>
    %4 = vector.broadcast %3 : vector<1x128xf32> to vector<8x128xf32>
    %5 = arith.addf %2, %4 : vector<8x128xf32>
    %cst_5 = arith.constant 0.000000e+00 : f32
    %6 = vector.broadcast %cst_5 : f32 to vector<8x128xf32>
    %7 = arith.maximumf %5, %6 : vector<8x128xf32>
    %c0_6 = arith.constant 0 : index
    %c0_7 = arith.constant 0 : index
    %8 = vector.load %arg4[%c0_6, %c0_7] : memref<128x16xf32, #tpu.memory_space<vmem>>, vector<128x16xf32>
    %cst_8 = arith.constant dense<0.000000e+00> : vector<8x16xf32>
    %9 = tpu.matmul %7, %8, %cst_8 {dimension_numbers = #tpu.dot_dimension_numbers<[1], [0], [0], [1], [0, 0, 1, 1], [], []>} : vector<8x128xf32>, vector<128x16xf32>, vector<8x16xf32> -> vector<8x16xf32>
    %c0_9 = arith.constant 0 : index
    %c0_10 = arith.constant 0 : index
    %10 = vector.load %arg5[%c0_9, %c0_10] : memref<1x16xf32, #tpu.memory_space<vmem>>, vector<1x16xf32>
    %11 = vector.broadcast %10 : vector<1x16xf32> to vector<8x16xf32>
    %12 = arith.addf %9, %11 : vector<8x16xf32>
    %c0_11 = arith.constant 0 : index
    %c0_12 = arith.constant 0 : index
    %13 = vector.load %arg6[%c0_11, %c0_12] : memref<8x16xf32, #tpu.memory_space<vmem>>, vector<8x16xf32>
    tpu.vector_store %arg6[%c0_11, %c0_12], %12 {strides = array<i32>} : memref<8x16xf32, #tpu.memory_space<vmem>>, vector<8x16xf32>,
    return
  }
  func.func @transform_0(%arg0: i32) -> (i32, i32) {
    %c0_i32 = arith.constant 0 : i32
    %c0_i32_0 = arith.constant 0 : i32
    return %arg0, %c0_i32 : i32, i32
  }
  func.func @transform_1(%arg0: i32) -> (i32, i32) {
    %c0_i32 = arith.constant 0 : i32
    %c0_i32_0 = arith.constant 0 : i32
    %c0_i32_1 = arith.constant 0 : i32
    return %c0_i32, %c0_i32_0 : i32, i32
  }
  func.func @transform_2(%arg0: i32) -> (i32, i32) {
    %c0_i32 = arith.constant 0 : i32
    %c0_i32_0 = arith.constant 0 : i32
    %c0_i32_1 = arith.constant 0 : i32
    return %c0_i32, %c0_i32_0 : i32, i32
  }
  func.func @transform_3(%arg0: i32) -> (i32, i32) {
    %c0_i32 = arith.constant 0 : i32
    %c0_i32_0 = arith.constant 0 : i32
    %c0_i32_1 = arith.constant 0 : i32
    return %c0_i32, %c0_i32_0 : i32, i32
  }
  func.func @transform_4(%arg0: i32) -> (i32, i32) {
    %c0_i32 = arith.constant 0 : i32
    %c0_i32_0 = arith.constant 0 : i32
    %c0_i32_1 = arith.constant 0 : i32
    return %c0_i32, %c0_i32_0 : i32, i32
  }
  func.func @transform_5(%arg0: i32) -> (i32, i32) {
    %c0_i32 = arith.constant 0 : i32
    %c0_i32_0 = arith.constant 0 : i32
    return %arg0, %c0_i32 : i32, i32
  }
}

module attributes {stable_mosaic.version = 11 : i64} {
  func.func @base_tower_kernel(%arg0: i32, %arg1: memref<8x32xf32, #tpu.memory_space<vmem>>, %arg2: memref<32x128xf32, #tpu.memory_space<vmem>>, %arg3: memref<1x128xf32, #tpu.memory_space<vmem>>, %arg4: memref<128x16xf32, #tpu.memory_space<vmem>>, %arg5: memref<1x16xf32, #tpu.memory_space<vmem>>, %arg6: memref<8x16xf32, #tpu.memory_space<vmem>>) attributes {dimension_semantics = [#tpu.dimension_semantics<parallel>], iteration_bounds = array<i64: 1>, scalar_prefetch = 0 : i64, scratch_operands = 0 : i64, tpu.core_type = #tpu.core_type<tc>, window_params = [{transform_indices = @transform_0, window_bounds = array<i64: 8, 32>}, {pipeline_mode = #tpu.pipeline_mode<synchronous>, transform_indices = @transform_1, window_bounds = array<i64: 32, 128>}, {pipeline_mode = #tpu.pipeline_mode<synchronous>, transform_indices = @transform_2, window_bounds = array<i64: 1, 128>}, {pipeline_mode = #tpu.pipeline_mode<synchronous>, transform_indices = @transform_3, window_bounds = array<i64: 128, 16>}, {pipeline_mode = #tpu.pipeline_mode<synchronous>, transform_indices = @transform_4, window_bounds = array<i64: 1, 16>}, {transform_indices = @transform_5, window_bounds = array<i64: 8, 16>}]} {
    %c0 = arith.constant 0 : index
    %c0_0 = arith.constant 0 : index
    %0 = vector.load %arg1[%c0, %c0_0] : memref<8x32xf32, #tpu.memory_space<vmem>>, vector<8x32xf32>
    %c0_1 = arith.constant 0 : index
    %c0_2 = arith.constant 0 : index
    %1 = vector.load %arg2[%c0_1, %c0_2] : memref<32x128xf32, #tpu.memory_space<vmem>>, vector<32x128xf32>
    %cst = arith.constant dense<0.000000e+00> : vector<8x128xf32>
    %2 = tpu.matmul %0, %1, %cst {dimension_numbers = #tpu.dot_dimension_numbers<[1], [0], [0], [1], [0, 0, 1, 1], [], []>} : vector<8x32xf32>, vector<32x128xf32>, vector<8x128xf32> -> vector<8x128xf32>
    %c0_3 = arith.constant 0 : index
    %c0_4 = arith.constant 0 : index
    %3 = vector.load %arg3[%c0_3, %c0_4] : memref<1x128xf32, #tpu.memory_space<vmem>>, vector<1x128xf32>
    %4 = vector.broadcast %3 : vector<1x128xf32> to vector<8x128xf32>
    %5 = arith.addf %2, %4 : vector<8x128xf32>
    %cst_5 = arith.constant 0.000000e+00 : f32
    %6 = vector.broadcast %cst_5 : f32 to vector<8x128xf32>
    %7 = arith.maximumf %5, %6 : vector<8x128xf32>
    %c0_6 = arith.constant 0 : index
    %c0_7 = arith.constant 0 : index
    %8 = vector.load %arg4[%c0_6, %c0_7] : memref<128x16xf32, #tpu.memory_space<vmem>>, vector<128x16xf32>
    %cst_8 = arith.constant dense<0.000000e+00> : vector<8x16xf32>
    %9 = tpu.matmul %7, %8, %cst_8 {dimension_numbers = #tpu.dot_dimension_numbers<[1], [0], [0], [1], [0, 0, 1, 1], [], []>} : vector<8x128xf32>, vector<128x16xf32>, vector<8x16xf32> -> vector<8x16xf32>
    %c0_9 = arith.constant 0 : index
    %c0_10 = arith.constant 0 : index
    %10 = vector.load %arg5[%c0_9, %c0_10] : memref<1x16xf32, #tpu.memory_space<vmem>>, vector<1x16xf32>
    %11 = vector.broadcast %10 : vector<1x16xf32> to vector<8x16xf32>
    %12 = arith.addf %9, %11 : vector<8x16xf32>
    %c0_11 = arith.constant 0 : index
    %c0_12 = arith.constant 0 : index
    %13 = vector.load %arg6[%c0_11, %c0_12] : memref<8x16xf32, #tpu.memory_space<vmem>>, vector<8x16xf32>
    tpu.vector_store %arg6[%c0_11, %c0_12], %12 {strides = array<i32>} : memref<8x16xf32, #tpu.memory_space<vmem>>, vector<8x16xf32>,
    return
  }
  func.func @transform_0(%arg0: i32) -> (i32, i32) {
    %c0_i32 = arith.constant 0 : i32
    %c0_i32_0 = arith.constant 0 : i32
    return %arg0, %c0_i32 : i32, i32
  }
  func.func @transform_1(%arg0: i32) -> (i32, i32) {
    %c0_i32 = arith.constant 0 : i32
    %c0_i32_0 = arith.constant 0 : i32
    %c0_i32_1 = arith.constant 0 : i32
    return %c0_i32, %c0_i32_0 : i32, i32
  }
  func.func @transform_2(%arg0: i32) -> (i32, i32) {
    %c0_i32 = arith.constant 0 : i32
    %c0_i32_0 = arith.constant 0 : i32
    %c0_i32_1 = arith.constant 0 : i32
    return %c0_i32, %c0_i32_0 : i32, i32
  }
  func.func @transform_3(%arg0: i32) -> (i32, i32) {
    %c0_i32 = arith.constant 0 : i32
    %c0_i32_0 = arith.constant 0 : i32
    %c0_i32_1 = arith.constant 0 : i32
    return %c0_i32, %c0_i32_0 : i32, i32
  }
  func.func @transform_4(%arg0: i32) -> (i32, i32) {
    %c0_i32 = arith.constant 0 : i32
    %c0_i32_0 = arith.constant 0 : i32
    %c0_i32_1 = arith.constant 0 : i32
    return %c0_i32, %c0_i32_0 : i32, i32
  }
  func.func @transform_5(%arg0: i32) -> (i32, i32) {
    %c0_i32 = arith.constant 0 : i32
    %c0_i32_0 = arith.constant 0 : i32
    return %arg0, %c0_i32 : i32, i32
  }
}

</mosaic_0001>

<llo_original>
// kernel: tpu_custom_call.1
$region0: #{tpu_custom_call.1}
  #allocation0 [shape = 'u32[]', space=smem, size = 0x4, offset = 0x4, fixed_abs, tag = 'smem constant byte address 0x4 - core index']
  #allocation1 [shape = 'u32[72,128]{1,0:T(1,128)}', space=vmem, size = 0x9000, scoped, tag = 'internal scratch']
  %s0 = inlined_call_operand.vmem [shape: f32[8,32], index: 0, kind: input, shape index: {}]
  %s1 = inlined_call_operand.vmem [shape: f32[32,128], index: 1, kind: input, shape index: {}]
  %s2 = inlined_call_operand.vmem [shape: f32[1,128], index: 2, kind: input, shape index: {}]
  %s3 = inlined_call_operand.vmem [shape: f32[128,16], index: 3, kind: input, shape index: {}]
  %s4 = inlined_call_operand.vmem [shape: f32[1,16], index: 4, kind: input, shape index: {}]
  %s5 = inlined_call_operand.hbm [shape: f32[8,16], index: 5, kind: output, shape index: {}]
  %s6 = sld [smem:[#allocation0]]
  $region30: #{tpu_custom_call.1} parent=0
    _
  %s8 = ssub.s32 1, %s6
  %s9 = scalar_select 0, %s8, %s6
  $region1: #{tpu_custom_call.1} parent=0
    #allocation2 [shape = 'u8[4096]{0}', space=vmem, size = 0x1000, scoped, tag = 'output window, operand 0, single buffered']
    #allocation3 [shape = 's32[1]{0}', space=sflag, size = 0x4, scoped, tag = 'scoped memory for tpu_custom_call.1']
    %10 = vsyncpa [#allocation3], 0
    // Predicated region
    $region2: #{tpu_custom_call.1} parent=1 // pred_check
      _
    $region3: #{tpu_custom_call.1} parent=1 // pred_check_branch
      %12 = sbr.rel (0) target = $region5
    $region4: #{tpu_custom_call.1} parent=1 // pred_region
      _
    $region5: #{tpu_custom_call.1} parent=1 // pred_fallthru
      _
    // Predicated region
    $region6: #{tpu_custom_call.1} parent=1 // pred_check
      _
    $region7: #{tpu_custom_call.1} parent=1 // pred_check_branch
      %14 = sbr.rel (0) target = $region9
    $region8: #{tpu_custom_call.1} parent=1 // pred_region
      _
    $region9: #{tpu_custom_call.1} parent=1 // pred_fallthru
      _
    // Predicated region
    $region10: #{tpu_custom_call.1} parent=1 // pred_check
      _
    $region11: #{tpu_custom_call.1} parent=1 // pred_check_branch
      %16 = sbr.rel (0) target = $region13
    $region12: #{tpu_custom_call.1} parent=1 // pred_region
      _
    $region13: #{tpu_custom_call.1} parent=1 // pred_fallthru
      _
    // Predicated region
    $region14: #{tpu_custom_call.1} parent=1 // pred_check
      _
    $region15: #{tpu_custom_call.1} parent=1 // pred_check_branch
      %18 = sbr.rel (0) target = $region17
    $region16: #{tpu_custom_call.1} parent=1 // pred_region
      _
    $region17: #{tpu_custom_call.1} parent=1 // pred_fallthru
      _
    // Predicated region
    $region18: #{tpu_custom_call.1} parent=1 // pred_check
      _
    $region19: #{tpu_custom_call.1} parent=1 // pred_check_branch
      %20 = sbr.rel (0) target = $region21
    $region20: #{tpu_custom_call.1} parent=1 // pred_region
      _
    $region21: #{tpu_custom_call.1} parent=1 // pred_fallthru
      _
    %v21 = vld [vmem:[%s0] sm:$0xff]
    %v22 = vld [vmem:[%s1] sm:$0xff]
    %v23 = vld [vmem:[%s1 + $0x8] sm:$0xff]
    %v24 = vld [vmem:[%s1 + $0x10] sm:$0xff]
    %v25 = vld [vmem:[%s1 + $0x18] sm:$0xff]
    %v26 = vld [vmem:[%s2] sm:$0x1]
    %v28 = vperm.slane %v26, 0
    %vm30 = vcmask 261120
    %v32 = vsel %vm30, %v21, 0
    %34 = vmatpush.msra.mxu0 0.0
    %35 = vmatpush.msra.mxu0 0.0
    %36 = vmatpush.msra.mxu0 0.0
    %37 = vmatpush.msra.mxu0 0.0
    %38 = vmatpush.msra.mxu0 0.0
    %39 = vmatpush.msra.mxu0 0.0
    %40 = vmatpush.msra.mxu0 0.0
    %41 = vmatpush.msra.mxu0 0.0
    %42 = vmatpush.msra.mxu0 0.0
    %43 = vmatpush.msra.mxu0 0.0
    %44 = vmatpush.msra.mxu0 0.0
    %45 = vmatpush.msra.mxu0 0.0
    %46 = vmatpush.msra.mxu0 %v25
    %47 = vmatpush.msra.mxu0 %v24
    %48 = vmatpush.msra.mxu0 %v23
    %49 = vmatpush.msra.mxu0 %v22
    %50 = vmatmul.f32.gmra.mxu0 %v32
    %v51 = vpop.f32.mrf.mxu0
    %v52 = vadd.f32 %v28, %v51
    %53 = vdwg.mxu0
    %v54 = vmax.f32 %v52, 0.0
    %v55 = vld [vmem:[%s3] sm:$0xff]
    %v56 = vld [vmem:[%s3 + $0x8] sm:$0xff]
    %v57 = vld [vmem:[%s3 + $0x10] sm:$0xff]
    %v58 = vld [vmem:[%s3 + $0x18] sm:$0xff]
    %v59 = vld [vmem:[%s3 + $0x20] sm:$0xff]
    %v60 = vld [vmem:[%s3 + $0x28] sm:$0xff]
    %v61 = vld [vmem:[%s3 + $0x30] sm:$0xff]
    %v62 = vld [vmem:[%s3 + $0x38] sm:$0xff]
    %v63 = vld [vmem:[%s3 + $0x40] sm:$0xff]
    %v64 = vld [vmem:[%s3 + $0x48] sm:$0xff]
    %v65 = vld [vmem:[%s3 + $0x50] sm:$0xff]
    %v66 = vld [vmem:[%s3 + $0x58] sm:$0xff]
    %v67 = vld [vmem:[%s3 + $0x60] sm:$0xff]
    %v68 = vld [vmem:[%s3 + $0x68] sm:$0xff]
    %v69 = vld [vmem:[%s3 + $0x70] sm:$0xff]
    %v70 = vld [vmem:[%s3 + $0x78] sm:$0xff]
    %v71 = vld [vmem:[%s4] sm:$0x1]
    %v73 = vperm.slane %v71, 0
    %75 = vmatpush.msra.mxu0 %v70
    %76 = vmatpush.msra.mxu0 %v69
    %77 = vmatpush.msra.mxu0 %v68
    %78 = vmatpush.msra.mxu0 %v67
    %79 = vmatpush.msra.mxu0 %v66
    %80 = vmatpush.msra.mxu0 %v65
    %81 = vmatpush.msra.mxu0 %v64
    %82 = vmatpush.msra.mxu0 %v63
    %83 = vmatpush.msra.mxu0 %v62
    %84 = vmatpush.msra.mxu0 %v61
    %85 = vmatpush.msra.mxu0 %v60
    %86 = vmatpush.msra.mxu0 %v59
    %87 = vmatpush.msra.mxu0 %v58
    %88 = vmatpush.msra.mxu0 %v57
    %89 = vmatpush.msra.mxu0 %v56
    %90 = vmatpush.msra.mxu0 %v55
    %91 = vmatmul.f32.gmra.mxu0 %v54
    %v92 = vpop.f32.mrf.mxu0
    %v93 = vadd.f32 %v73, %v92
    %94 = vdwg.mxu0
    %vm95 = vcmask 130048
    %96 = vst.msk [vmem:[#allocation2] sm:$0xff] %vm95, %v93
    // Predicated region
    $region22: #{tpu_custom_call.1} parent=1 // pred_check
      _
    $region23: #{tpu_custom_call.1} parent=1 // pred_check_branch
      %98 = sbr.rel (0) target = $region25
    $region24: #{tpu_custom_call.1} parent=1 // pred_region
      %100 = vsyncadd [#allocation3], 0
      %s102 = sshll.u32 [#allocation2], 4
      %s103 = int_to_ptr.vmem [resolvable:$true] %s102
      %s104 = sshll.u32 %s5, 4
      %s105 = int_to_ptr.hbm [resolvable:$true] %s104
      %107 = dma.vmem_to_hbm [thread:$0]  %s103, 128, %s105, [#allocation3]
    $region25: #{tpu_custom_call.1} parent=1 // pred_fallthru
      _
    // Predicated region
    $region26: #{tpu_custom_call.1} parent=1 // pred_check
      _
    $region27: #{tpu_custom_call.1} parent=1 // pred_check_branch
      %109 = sbr.rel (0) target = $region29
    $region28: #{tpu_custom_call.1} parent=1 // pred_region
      %111 = dma.done [#allocation3], 128
    $region29: #{tpu_custom_call.1} parent=1 // pred_fallthru
      _
    %112 = vsyncpa [#allocation3], 1

// kernel: tpu_custom_call.1
$region0: #{tpu_custom_call.1}
  #allocation0 [shape = 'u32[]', space=smem, size = 0x4, offset = 0x4, fixed_abs, tag = 'smem constant byte address 0x4 - core index']
  #allocation1 [shape = 'u32[72,128]{1,0:T(1,128)}', space=vmem, size = 0x9000, scoped, tag = 'internal scratch']
  %s0 = inlined_call_operand.vmem [shape: f32[8,32], index: 0, kind: input, shape index: {}]
  %s1 = inlined_call_operand.vmem [shape: f32[32,128], index: 1, kind: input, shape index: {}]
  %s2 = inlined_call_operand.vmem [shape: f32[1,128], index: 2, kind: input, shape index: {}]
  %s3 = inlined_call_operand.vmem [shape: f32[128,16], index: 3, kind: input, shape index: {}]
  %s4 = inlined_call_operand.vmem [shape: f32[1,16], index: 4, kind: input, shape index: {}]
  %s5 = inlined_call_operand.hbm [shape: f32[8,16], index: 5, kind: output, shape index: {}]
  %s6 = sld [smem:[#allocation0]]
  $region30: #{tpu_custom_call.1} parent=0
    _
  %s8 = ssub.s32 1, %s6
  %s9 = scalar_select 0, %s8, %s6
  $region1: #{tpu_custom_call.1} parent=0
    #allocation2 [shape = 'u8[4096]{0}', space=vmem, size = 0x1000, scoped, tag = 'output window, operand 0, single buffered']
    #allocation3 [shape = 's32[1]{0}', space=sflag, size = 0x4, scoped, tag = 'scoped memory for tpu_custom_call.1']
    %10 = vsyncpa [#allocation3], 0
    // Predicated region
    $region2: #{tpu_custom_call.1} parent=1 // pred_check
      _
    $region3: #{tpu_custom_call.1} parent=1 // pred_check_branch
      %12 = sbr.rel (0) target = $region5
    $region4: #{tpu_custom_call.1} parent=1 // pred_region
      _
    $region5: #{tpu_custom_call.1} parent=1 // pred_fallthru
      _
    // Predicated region
    $region6: #{tpu_custom_call.1} parent=1 // pred_check
      _
    $region7: #{tpu_custom_call.1} parent=1 // pred_check_branch
      %14 = sbr.rel (0) target = $region9
    $region8: #{tpu_custom_call.1} parent=1 // pred_region
      _
    $region9: #{tpu_custom_call.1} parent=1 // pred_fallthru
      _
    // Predicated region
    $region10: #{tpu_custom_call.1} parent=1 // pred_check
      _
    $region11: #{tpu_custom_call.1} parent=1 // pred_check_branch
      %16 = sbr.rel (0) target = $region13
    $region12: #{tpu_custom_call.1} parent=1 // pred_region
      _
    $region13: #{tpu_custom_call.1} parent=1 // pred_fallthru
      _
    // Predicated region
    $region14: #{tpu_custom_call.1} parent=1 // pred_check
      _
    $region15: #{tpu_custom_call.1} parent=1 // pred_check_branch
      %18 = sbr.rel (0) target = $region17
    $region16: #{tpu_custom_call.1} parent=1 // pred_region
      _
    $region17: #{tpu_custom_call.1} parent=1 // pred_fallthru
      _
    // Predicated region
    $region18: #{tpu_custom_call.1} parent=1 // pred_check
      _
    $region19: #{tpu_custom_call.1} parent=1 // pred_check_branch
      %20 = sbr.rel (0) target = $region21
    $region20: #{tpu_custom_call.1} parent=1 // pred_region
      _
    $region21: #{tpu_custom_call.1} parent=1 // pred_fallthru
      _
    %v21 = vld [vmem:[%s0] sm:$0xff]
    %v22 = vld [vmem:[%s1] sm:$0xff]
    %v23 = vld [vmem:[%s1 + $0x8] sm:$0xff]
    %v24 = vld [vmem:[%s1 + $0x10] sm:$0xff]
    %v25 = vld [vmem:[%s1 + $0x18] sm:$0xff]
    %v26 = vld [vmem:[%s2] sm:$0x1]
    %v28 = vperm.slane %v26, 0
    %vm30 = vcmask 261120
    %v32 = vsel %vm30, %v21, 0
    %34 = vmatpush.msra.mxu0 0.0
    %35 = vmatpush.msra.mxu0 0.0
    %36 = vmatpush.msra.mxu0 0.0
    %37 = vmatpush.msra.mxu0 0.0
    %38 = vmatpush.msra.mxu0 0.0
    %39 = vmatpush.msra.mxu0 0.0
    %40 = vmatpush.msra.mxu0 0.0
    %41 = vmatpush.msra.mxu0 0.0
    %42 = vmatpush.msra.mxu0 0.0
    %43 = vmatpush.msra.mxu0 0.0
    %44 = vmatpush.msra.mxu0 0.0
    %45 = vmatpush.msra.mxu0 0.0
    %46 = vmatpush.msra.mxu0 %v25
    %47 = vmatpush.msra.mxu0 %v24
    %48 = vmatpush.msra.mxu0 %v23
    %49 = vmatpush.msra.mxu0 %v22
    %50 = vmatmul.f32.gmra.mxu0 %v32
    %v51 = vpop.f32.mrf.mxu0
    %v52 = vadd.f32 %v28, %v51
    %53 = vdwg.mxu0
    %v54 = vmax.f32 %v52, 0.0
    %v55 = vld [vmem:[%s3] sm:$0xff]
    %v56 = vld [vmem:[%s3 + $0x8] sm:$0xff]
    %v57 = vld [vmem:[%s3 + $0x10] sm:$0xff]
    %v58 = vld [vmem:[%s3 + $0x18] sm:$0xff]
    %v59 = vld [vmem:[%s3 + $0x20] sm:$0xff]
    %v60 = vld [vmem:[%s3 + $0x28] sm:$0xff]
    %v61 = vld [vmem:[%s3 + $0x30] sm:$0xff]
    %v62 = vld [vmem:[%s3 + $0x38] sm:$0xff]
    %v63 = vld [vmem:[%s3 + $0x40] sm:$0xff]
    %v64 = vld [vmem:[%s3 + $0x48] sm:$0xff]
    %v65 = vld [vmem:[%s3 + $0x50] sm:$0xff]
    %v66 = vld [vmem:[%s3 + $0x58] sm:$0xff]
    %v67 = vld [vmem:[%s3 + $0x60] sm:$0xff]
    %v68 = vld [vmem:[%s3 + $0x68] sm:$0xff]
    %v69 = vld [vmem:[%s3 + $0x70] sm:$0xff]
    %v70 = vld [vmem:[%s3 + $0x78] sm:$0xff]
    %v71 = vld [vmem:[%s4] sm:$0x1]
    %v73 = vperm.slane %v71, 0
    %75 = vmatpush.msra.mxu0 %v70
    %76 = vmatpush.msra.mxu0 %v69
    %77 = vmatpush.msra.mxu0 %v68
    %78 = vmatpush.msra.mxu0 %v67
    %79 = vmatpush.msra.mxu0 %v66
    %80 = vmatpush.msra.mxu0 %v65
    %81 = vmatpush.msra.mxu0 %v64
    %82 = vmatpush.msra.mxu0 %v63
    %83 = vmatpush.msra.mxu0 %v62
    %84 = vmatpush.msra.mxu0 %v61
    %85 = vmatpush.msra.mxu0 %v60
    %86 = vmatpush.msra.mxu0 %v59
    %87 = vmatpush.msra.mxu0 %v58
    %88 = vmatpush.msra.mxu0 %v57
    %89 = vmatpush.msra.mxu0 %v56
    %90 = vmatpush.msra.mxu0 %v55
    %91 = vmatmul.f32.gmra.mxu0 %v54
    %v92 = vpop.f32.mrf.mxu0
    %v93 = vadd.f32 %v73, %v92
    %94 = vdwg.mxu0
    %vm95 = vcmask 130048
    %96 = vst.msk [vmem:[#allocation2] sm:$0xff] %vm95, %v93
    // Predicated region
    $region22: #{tpu_custom_call.1} parent=1 // pred_check
      _
    $region23: #{tpu_custom_call.1} parent=1 // pred_check_branch
      %98 = sbr.rel (0) target = $region25
    $region24: #{tpu_custom_call.1} parent=1 // pred_region
      %100 = vsyncadd [#allocation3], 0
      %s102 = sshll.u32 [#allocation2], 4
      %s103 = int_to_ptr.vmem [resolvable:$true] %s102
      %s104 = sshll.u32 %s5, 4
      %s105 = int_to_ptr.hbm [resolvable:$true] %s104
      %107 = dma.vmem_to_hbm [thread:$0]  %s103, 128, %s105, [#allocation3]
    $region25: #{tpu_custom_call.1} parent=1 // pred_fallthru
      _
    // Predicated region
    $region26: #{tpu_custom_call.1} parent=1 // pred_check
      _
    $region27: #{tpu_custom_call.1} parent=1 // pred_check_branch
      %109 = sbr.rel (0) target = $region29
    $region28: #{tpu_custom_call.1} parent=1 // pred_region
      %111 = dma.done [#allocation3], 128
    $region29: #{tpu_custom_call.1} parent=1 // pred_fallthru
      _
    %112 = vsyncpa [#allocation3], 1

</llo_original>
